<compile_context>
chip_gen: v6e
topology: v6e:2x2x1
jax: 0.10.0
libtpu: 0.0.40
codegen_flags: <defaults>
</compile_context>

<pallas_src>
import jax
import jax.numpy as jnp
from jax.experimental import pallas as pl
from jax.experimental.pallas import tpu as pltpu


def _make_conv1x1_cat_kernel(n_batch, c1):
    """Build a kernel with the batch size and concat split baked in (static)."""

    def kernel(x1_ref, x2_ref, w_ref, b_ref, o_ref):
        # x1_ref: (N, C1, HW), x2_ref: (N, C2, HW)   (channels on sublanes)
        # w_ref:  (Cout, C1 + C2)                    (full 1x1 conv weight)
        # b_ref:  (Cout, 1)
        # o_ref:  (N, Cout, HW)                      (lane-dense output)
        w1 = w_ref[:, :c1]          # static slices of a VMEM ref: free views
        w2 = w_ref[:, c1:]
        bias = b_ref[...]           # (Cout, 1)

        # N is tiny (2): static unrolled loop, one pair of MXU dots per image.
        for i in range(n_batch):
            acc = jnp.broadcast_to(
                bias, (o_ref.shape[1], o_ref.shape[2])).astype(jnp.float32)
            acc = acc + jnp.dot(w1, x1_ref[i],
                                preferred_element_type=jnp.float32)
            acc = acc + jnp.dot(w2, x2_ref[i],
                                preferred_element_type=jnp.float32)
            o_ref[i] = acc.astype(o_ref.dtype)

    return kernel


def conv1x1_cat_nchw(x1, x2, w, b):
    """x1: (N, C1, HW), x2: (N, C2, HW), w: (Cout, C1+C2), b: (Cout, 1)
    -> (N, Cout, HW). Fused concat + 1x1 conv, single kernel invocation."""
    n, c1, hw = x1.shape
    _, c2, _ = x2.shape
    cout, ctot = w.shape
    assert ctot == c1 + c2

    itemsize = jnp.dtype(x1.dtype).itemsize
    cost = pl.CostEstimate(
        flops=2 * n * cout * ctot * hw,
        transcendentals=0,
        bytes_accessed=(x1.size + x2.size + w.size + b.size
                        + n * cout * hw) * itemsize,
    )

    vmem_spec = pl.BlockSpec(memory_space=pltpu.MemorySpace.VMEM)
    return pl.pallas_call(
        _make_conv1x1_cat_kernel(n, c1),
        out_shape=jax.ShapeDtypeStruct((n, cout, hw), x1.dtype),
        in_specs=[vmem_spec, vmem_spec, vmem_spec, vmem_spec],
        out_specs=vmem_spec,
        cost_estimate=cost,
    )(x1, x2, w, b)


def combinetworks_forward(prior_mask, keypoints_heatmap, weight, bias):
    """NCHW inputs, NCHW output — matches the PyTorch module semantics.

    weight: (heatmap_channels, combine_channels) == Conv2d 1x1 weight squeezed
    bias:   (heatmap_channels,)
    """
    n, c1, h, w = prior_mask.shape
    _, c2, _, _ = keypoints_heatmap.shape
    cout = weight.shape[0]
    hw = h * w

    # Free contiguous reshapes (no layout change): NCHW -> (N, C, H*W)
    x1 = prior_mask.reshape(n, c1, hw)
    x2 = keypoints_heatmap.reshape(n, c2, hw)
    b = bias.reshape(cout, 1)

    out = conv1x1_cat_nchw(x1, x2, weight, b)    # (N, Cout, H*W)
    return out.reshape(n, cout, h, w)            # free reshape back to NCHW


if __name__ == "__main__":
    # Small shapes consistent with the module:
    #   prior_mask:         (2, 4, 16, 16)
    #   keypoints_heatmap:  (2, 12, 16, 16)
    #   combine_channels  = 4 + 12 = 16
    #   heatmap_channels  = 12
    N, C_PRIOR, C_HEAT, H, W = 2, 4, 12, 16, 16
    C_COMBINE = C_PRIOR + C_HEAT

    key = jax.random.PRNGKey(0)
    k1, k2, k3, k4 = jax.random.split(key, 4)

    prior_mask = jax.random.normal(k1, (N, C_PRIOR, H, W), dtype=jnp.float32)
    keypoints_heatmap = jax.random.normal(
        k2, (N, C_HEAT, H, W), dtype=jnp.float32)

    # Deterministic Conv2d(combine_channels, heatmap_channels, k=1) params
    # (kaiming-uniform-style bound, seeded — synthetic, no checkpoint).
    bound = 1.0 / (C_COMBINE ** 0.5)
    weight = jax.random.uniform(
        k3, (C_HEAT, C_COMBINE), minval=-bound, maxval=bound,
        dtype=jnp.float32)
    bias = jax.random.uniform(
        k4, (C_HEAT,), minval=-bound, maxval=bound, dtype=jnp.float32)

    out = combinetworks_forward(prior_mask, keypoints_heatmap, weight, bias)
    out = jax.block_until_ready(out)

    # Pure-JAX reference check (cat + 1x1 conv as dense matmul).
    combine = jnp.concatenate([prior_mask, keypoints_heatmap], axis=1)
    ref = jnp.einsum("nchw,oc->nohw", combine, weight) + bias[None, :, None, None]
    assert out.shape == (N, C_HEAT, H, W)
    assert jnp.allclose(out, ref, atol=1e-4, rtol=1e-4)

    print("KERNEL_OK")
</pallas_src>

<mosaic_0001>
module attributes {stable_mosaic.version = 11 : i64} {
  func.func @kernel(%arg0: memref<2x4x256xf32, #tpu.memory_space<vmem>>, %arg1: memref<2x12x256xf32, #tpu.memory_space<vmem>>, %arg2: memref<12x16xf32, #tpu.memory_space<vmem>>, %arg3: memref<12x1xf32, #tpu.memory_space<vmem>>, %arg4: memref<2x12x256xf32, #tpu.memory_space<vmem>>) attributes {dimension_semantics = [], scalar_prefetch = 0 : i64, scratch_operands = 0 : i64, tpu.core_type = #tpu.core_type<tc>} {
    %c0 = arith.constant 0 : index
    %c0_0 = arith.constant 0 : index
    %0 = vector.load %arg2[%c0, %c0_0] : memref<12x16xf32, #tpu.memory_space<vmem>>, vector<12x4xf32>
    %c0_1 = arith.constant 0 : index
    %c4 = arith.constant 4 : index
    %1 = vector.load %arg2[%c0_1, %c4] : memref<12x16xf32, #tpu.memory_space<vmem>>, vector<12x12xf32>
    %c0_2 = arith.constant 0 : index
    %c0_3 = arith.constant 0 : index
    %2 = vector.load %arg3[%c0_2, %c0_3] : memref<12x1xf32, #tpu.memory_space<vmem>>, vector<12x1xf32>
    %3 = vector.shape_cast %2 : vector<12x1xf32> to vector<12x1xf32>
    %4 = vector.broadcast %3 : vector<12x1xf32> to vector<12x256xf32>
    %c0_4 = arith.constant 0 : index
    %c0_5 = arith.constant 0 : index
    %c0_6 = arith.constant 0 : index
    %5 = vector.load %arg0[%c0_4, %c0_5, %c0_6] : memref<2x4x256xf32, #tpu.memory_space<vmem>>, vector<1x4x256xf32>
    %6 = vector.shape_cast %5 : vector<1x4x256xf32> to vector<4x256xf32>
    %cst = arith.constant dense<0.000000e+00> : vector<12x256xf32>
    %7 = tpu.matmul %0, %6, %cst {dimension_numbers = #tpu.dot_dimension_numbers<[1], [0], [0], [1], [0, 0, 1, 1], [], []>} : vector<12x4xf32>, vector<4x256xf32>, vector<12x256xf32> -> vector<12x256xf32>
    %8 = arith.addf %4, %7 : vector<12x256xf32>
    %c0_7 = arith.constant 0 : index
    %c0_8 = arith.constant 0 : index
    %c0_9 = arith.constant 0 : index
    %9 = vector.load %arg1[%c0_7, %c0_8, %c0_9] : memref<2x12x256xf32, #tpu.memory_space<vmem>>, vector<1x12x256xf32>
    %10 = vector.shape_cast %9 : vector<1x12x256xf32> to vector<12x256xf32>
    %cst_10 = arith.constant dense<0.000000e+00> : vector<12x256xf32>
    %11 = tpu.matmul %1, %10, %cst_10 {dimension_numbers = #tpu.dot_dimension_numbers<[1], [0], [0], [1], [0, 0, 1, 1], [], []>} : vector<12x12xf32>, vector<12x256xf32>, vector<12x256xf32> -> vector<12x256xf32>
    %12 = arith.addf %8, %11 : vector<12x256xf32>
    %c0_11 = arith.constant 0 : index
    %c0_12 = arith.constant 0 : index
    %c0_13 = arith.constant 0 : index
    %13 = vector.load %arg4[%c0_11, %c0_12, %c0_13] : memref<2x12x256xf32, #tpu.memory_space<vmem>>, vector<1x12x256xf32>
    %14 = vector.shape_cast %13 : vector<1x12x256xf32> to vector<12x256xf32>
    %15 = vector.shape_cast %12 : vector<12x256xf32> to vector<1x12x256xf32>
    tpu.vector_store %arg4[%c0_11, %c0_12, %c0_13], %15 {strides = array<i32>} : memref<2x12x256xf32, #tpu.memory_space<vmem>>, vector<1x12x256xf32>,
    %16 = vector.shape_cast %2 : vector<12x1xf32> to vector<12x1xf32>
    %17 = vector.broadcast %16 : vector<12x1xf32> to vector<12x256xf32>
    %c1 = arith.constant 1 : index
    %c0_14 = arith.constant 0 : index
    %c0_15 = arith.constant 0 : index
    %18 = vector.load %arg0[%c1, %c0_14, %c0_15] : memref<2x4x256xf32, #tpu.memory_space<vmem>>, vector<1x4x256xf32>
    %19 = vector.shape_cast %18 : vector<1x4x256xf32> to vector<4x256xf32>
    %cst_16 = arith.constant dense<0.000000e+00> : vector<12x256xf32>
    %20 = tpu.matmul %0, %19, %cst_16 {dimension_numbers = #tpu.dot_dimension_numbers<[1], [0], [0], [1], [0, 0, 1, 1], [], []>} : vector<12x4xf32>, vector<4x256xf32>, vector<12x256xf32> -> vector<12x256xf32>
    %21 = arith.addf %17, %20 : vector<12x256xf32>
    %c1_17 = arith.constant 1 : index
    %c0_18 = arith.constant 0 : index
    %c0_19 = arith.constant 0 : index
    %22 = vector.load %arg1[%c1_17, %c0_18, %c0_19] : memref<2x12x256xf32, #tpu.memory_space<vmem>>, vector<1x12x256xf32>
    %23 = vector.shape_cast %22 : vector<1x12x256xf32> to vector<12x256xf32>
    %cst_20 = arith.constant dense<0.000000e+00> : vector<12x256xf32>
    %24 = tpu.matmul %1, %23, %cst_20 {dimension_numbers = #tpu.dot_dimension_numbers<[1], [0], [0], [1], [0, 0, 1, 1], [], []>} : vector<12x12xf32>, vector<12x256xf32>, vector<12x256xf32> -> vector<12x256xf32>
    %25 = arith.addf %21, %24 : vector<12x256xf32>
    %c1_21 = arith.constant 1 : index
    %c0_22 = arith.constant 0 : index
    %c0_23 = arith.constant 0 : index
    %26 = vector.load %arg4[%c1_21, %c0_22, %c0_23] : memref<2x12x256xf32, #tpu.memory_space<vmem>>, vector<1x12x256xf32>
    %27 = vector.shape_cast %26 : vector<1x12x256xf32> to vector<12x256xf32>
    %28 = vector.shape_cast %25 : vector<12x256xf32> to vector<1x12x256xf32>
    tpu.vector_store %arg4[%c1_21, %c0_22, %c0_23], %28 {strides = array<i32>} : memref<2x12x256xf32, #tpu.memory_space<vmem>>, vector<1x12x256xf32>,
    return
  }
}

</mosaic_0001>

<llo_original>
// kernel: tpu_custom_call.1
$region0: #{tpu_custom_call.1}
  #allocation0 [shape = 'u32[]', space=smem, size = 0x4, offset = 0x4, fixed_abs, tag = 'smem constant byte address 0x4 - core index']
  #allocation1 [shape = 'u32[144,128]{1,0:T(1,128)}', space=vmem, size = 0x12000, scoped, tag = 'internal scratch']
  %s0 = inlined_call_operand.vmem [shape: f32[2,4,256], index: 0, kind: input, shape index: {}]
  %s1 = inlined_call_operand.vmem [shape: f32[2,12,256], index: 1, kind: input, shape index: {}]
  %s2 = inlined_call_operand.vmem [shape: f32[12,16], index: 2, kind: input, shape index: {}]
  %s3 = inlined_call_operand.vmem [shape: f32[12,1], index: 3, kind: input, shape index: {}]
  %s4 = inlined_call_operand.vmem [shape: f32[2,12,256], index: 4, kind: output, shape index: {}]
  %s5 = sld [smem:[#allocation0]]
  $region26: #{tpu_custom_call.1} parent=0
    _
  %s7 = ssub.s32 1, %s5
  %s8 = scalar_select 0, %s7, %s5
  // Predicated region
  $region2: #{tpu_custom_call.1} parent=0 // pred_check
    _
  $region3: #{tpu_custom_call.1} parent=0 // pred_check_branch
    %10 = sbr.rel (0) target = $region5
  $region4: #{tpu_custom_call.1} parent=0 // pred_region
    _
  $region5: #{tpu_custom_call.1} parent=0 // pred_fallthru
    _
  // Predicated region
  $region6: #{tpu_custom_call.1} parent=0 // pred_check
    _
  $region7: #{tpu_custom_call.1} parent=0 // pred_check_branch
    %12 = sbr.rel (0) target = $region9
  $region8: #{tpu_custom_call.1} parent=0 // pred_region
    _
  $region9: #{tpu_custom_call.1} parent=0 // pred_fallthru
    _
  // Predicated region
  $region10: #{tpu_custom_call.1} parent=0 // pred_check
    _
  $region11: #{tpu_custom_call.1} parent=0 // pred_check_branch
    %14 = sbr.rel (0) target = $region13
  $region12: #{tpu_custom_call.1} parent=0 // pred_region
    _
  $region13: #{tpu_custom_call.1} parent=0 // pred_fallthru
    _
  // Predicated region
  $region14: #{tpu_custom_call.1} parent=0 // pred_check
    _
  $region15: #{tpu_custom_call.1} parent=0 // pred_check_branch
    %16 = sbr.rel (0) target = $region17
  $region16: #{tpu_custom_call.1} parent=0 // pred_region
    _
  $region17: #{tpu_custom_call.1} parent=0 // pred_fallthru
    _
  %v17 = vld [vmem:[%s2] sm:$0xff]
  %v18 = vld [vmem:[%s2 + $0x8] sm:$0xf]
  %v19 = vld [vmem:[%s3] sm:$0xff]
  %v20 = vld [vmem:[%s3 + $0x8] sm:$0xf]
  %22 = vset.pattern.permute.xlu0 0
  %23 = vperm.xlu0 %22, %v19
  %v24 = vpop.permute.xlu0 %23
  %27 = vset.pattern.permute.xlu0 0
  %28 = vperm.xlu0 %27, %v20
  %v29 = vpop.permute.xlu0 %28
  %v31 = vld [vmem:[%s0] sm:$0xff]
  %v33 = vcombine.high %v31, %v31
  %vm34 = vcmask 31744
  %v36 = vsel %vm34, %v17, 0
  %v39 = vsel %vm34, %v18, 0
  %vm41 = vcmask 1043456
  %v42 = vsel %vm41, %v31, 0
  %v44 = vsel %vm41, %v33, 0
  %46 = vmatprep.subr.mxu0 0.0
  %47 = vmatpush1.msra.mxu0 0.0
  %48 = vmatprep.subr.mxu0 0.0
  %49 = vmatpush1.msra.mxu0 0.0
  %50 = vmatprep.subr.mxu0 0.0
  %51 = vmatpush1.msra.mxu0 0.0
  %52 = vmatprep.subr.mxu0 0.0
  %53 = vmatpush1.msra.mxu0 0.0
  %54 = vmatprep.subr.mxu0 0.0
  %55 = vmatpush1.msra.mxu0 0.0
  %56 = vmatprep.subr.mxu0 0.0
  %57 = vmatpush1.msra.mxu0 0.0
  %58 = vmatprep.subr.mxu0 0.0
  %59 = vmatpush1.msra.mxu0 0.0
  %60 = vmatprep.subr.mxu0 0.0
  %61 = vmatpush1.msra.mxu0 0.0
  %62 = vmatprep.subr.mxu0 0.0
  %63 = vmatpush1.msra.mxu0 0.0
  %64 = vmatprep.subr.mxu0 0.0
  %65 = vmatpush1.msra.mxu0 0.0
  %66 = vmatprep.subr.mxu0 0.0
  %67 = vmatpush1.msra.mxu0 0.0
  %68 = vmatprep.subr.mxu0 0.0
  %69 = vmatpush1.msra.mxu0 0.0
  %70 = vmatprep.subr.mxu0 0.0
  %71 = vmatpush1.msra.mxu0 0.0
  %72 = vmatprep.subr.mxu0 0.0
  %73 = vmatpush1.msra.mxu0 0.0
  %74 = vmatprep.subr.mxu0 0.0
  %75 = vmatpush1.msra.mxu0 0.0
  %76 = vmatprep.subr.mxu0 %v44
  %77 = vmatpush1.msra.mxu0 %v42
  %78 = vmatprep.subr.mxu0 0.0
  %79 = vmatpush2.msra.mxu0 0.0
  %80 = vmatprep.subr.mxu0 0.0
  %81 = vmatpush2.msra.mxu0 0.0
  %82 = vmatprep.subr.mxu0 0.0
  %83 = vmatpush2.msra.mxu0 0.0
  %84 = vmatprep.subr.mxu0 0.0
  %85 = vmatpush2.msra.mxu0 0.0
  %86 = vmatprep.subr.mxu0 0.0
  %87 = vmatpush2.msra.mxu0 0.0
  %88 = vmatprep.subr.mxu0 0.0
  %89 = vmatpush2.msra.mxu0 0.0
  %90 = vmatprep.subr.mxu0 0.0
  %91 = vmatpush2.msra.mxu0 0.0
  %92 = vmatprep.subr.mxu0 0.0
  %93 = vmatpush2.msra.mxu0 0.0
  %94 = vmatprep.subr.mxu0 0.0
  %95 = vmatpush2.msra.mxu0 0.0
  %96 = vmatprep.subr.mxu0 0.0
  %97 = vmatpush2.msra.mxu0 0.0
  %98 = vmatprep.subr.mxu0 0.0
  %99 = vmatpush2.msra.mxu0 0.0
  %100 = vmatprep.subr.mxu0 0.0
  %101 = vmatpush2.msra.mxu0 0.0
  %102 = vmatprep.subr.mxu0 0.0
  %103 = vmatpush2.msra.mxu0 0.0
  %104 = vmatprep.subr.mxu0 0.0
  %105 = vmatpush2.msra.mxu0 0.0
  %106 = vmatprep.subr.mxu0 0.0
  %107 = vmatpush2.msra.mxu0 0.0
  %108 = vmatprep.subr.mxu0 0.0
  %109 = vmatpush2.msra.mxu0 0.0
  %110 = vmatprep.mubr.f32.mxu0 0.0
  %111 = vmatmul.mubr.f32.gmra.mxu0 %v36
  %v112 = vpop.f32.mrf.mxu0
  %v113 = vadd.f32 0.0, %v112
  %v114 = vpop.f32.mrf.mxu0
  %v115 = vadd.f32 0.0, %v114
  %116 = vmatprep.mubr.f32.mxu0 0.0
  %117 = vmatmul.mubr.f32.gmra.mxu0 %v39
  %v118 = vpop.f32.mrf.mxu0
  %v119 = vadd.f32 0.0, %v118
  %v120 = vpop.f32.mrf.mxu0
  %v121 = vadd.f32 0.0, %v120
  %122 = vdwg.mxu0
  %v123 = vadd.f32 %v24, %v113
  %v124 = vadd.f32 %v24, %v115
  %v125 = vadd.f32 %v29, %v119
  %v126 = vadd.f32 %v29, %v121
  %v127 = vld [vmem:[%s1] sm:$0xff]
  %v128 = vld [vmem:[%s1 + $0x8] sm:$0xff]
  %v129 = vld [vmem:[%s1 + $0x10] sm:$0xf]
  %v130 = vld [vmem:[%s1 + $0x18] sm:$0xf]
  %131 = vrot.lane.b32.xlu0 %v17, 124
  %v132 = vpop.permute.xlu0 %131
  %133 = vrot.lane.b32.xlu0 %v18, 124
  %v134 = vpop.permute.xlu0 %133
  %vm135 = vcmask 97280
  %v136 = vsel %vm135, %v132, 0
  %v138 = vsel %vm135, %v134, 0
  %v141 = vsel %vm41, %v129, 0
  %v144 = vsel %vm41, %v130, 0
  %146 = vmatprep.subr.mxu0 0.0
  %147 = vmatpush1.msra.mxu0 0.0
  %148 = vmatprep.subr.mxu0 0.0
  %149 = vmatpush1.msra.mxu0 0.0
  %150 = vmatprep.subr.mxu0 0.0
  %151 = vmatpush1.msra.mxu0 0.0
  %152 = vmatprep.subr.mxu0 0.0
  %153 = vmatpush1.msra.mxu0 0.0
  %154 = vmatprep.subr.mxu0 0.0
  %155 = vmatpush1.msra.mxu0 0.0
  %156 = vmatprep.subr.mxu0 0.0
  %157 = vmatpush1.msra.mxu0 0.0
  %158 = vmatprep.subr.mxu0 0.0
  %159 = vmatpush1.msra.mxu0 0.0
  %160 = vmatprep.subr.mxu0 0.0
  %161 = vmatpush1.msra.mxu0 0.0
  %162 = vmatprep.subr.mxu0 0.0
  %163 = vmatpush1.msra.mxu0 0.0
  %164 = vmatprep.subr.mxu0 0.0
  %165 = vmatpush1.msra.mxu0 0.0
  %166 = vmatprep.subr.mxu0 0.0
  %167 = vmatpush1.msra.mxu0 0.0
  %168 = vmatprep.subr.mxu0 0.0
  %169 = vmatpush1.msra.mxu0 0.0
  %170 = vmatprep.subr.mxu0 0.0
  %171 = vmatpush1.msra.mxu0 0.0
  %172 = vmatprep.subr.mxu0 0.0
  %173 = vmatpush1.msra.mxu0 0.0
  %174 = vmatprep.subr.mxu0 %v144
  %175 = vmatpush1.msra.mxu0 %v141
  %176 = vmatprep.subr.mxu0 %v128
  %177 = vmatpush1.msra.mxu0 %v127
  %178 = vmatprep.subr.mxu0 0.0
  %179 = vmatpush2.msra.mxu0 0.0
  %180 = vmatprep.subr.mxu0 0.0
  %181 = vmatpush2.msra.mxu0 0.0
  %182 = vmatprep.subr.mxu0 0.0
  %183 = vmatpush2.msra.mxu0 0.0
  %184 = vmatprep.subr.mxu0 0.0
  %185 = vmatpush2.msra.mxu0 0.0
  %186 = vmatprep.subr.mxu0 0.0
  %187 = vmatpush2.msra.mxu0 0.0
  %188 = vmatprep.subr.mxu0 0.0
  %189 = vmatpush2.msra.mxu0 0.0
  %190 = vmatprep.subr.mxu0 0.0
  %191 = vmatpush2.msra.mxu0 0.0
  %192 = vmatprep.subr.mxu0 0.0
  %193 = vmatpush2.msra.mxu0 0.0
  %194 = vmatprep.subr.mxu0 0.0
  %195 = vmatpush2.msra.mxu0 0.0
  %196 = vmatprep.subr.mxu0 0.0
  %197 = vmatpush2.msra.mxu0 0.0
  %198 = vmatprep.subr.mxu0 0.0
  %199 = vmatpush2.msra.mxu0 0.0
  %200 = vmatprep.subr.mxu0 0.0
  %201 = vmatpush2.msra.mxu0 0.0
  %202 = vmatprep.subr.mxu0 0.0
  %203 = vmatpush2.msra.mxu0 0.0
  %204 = vmatprep.subr.mxu0 0.0
  %205 = vmatpush2.msra.mxu0 0.0
  %206 = vmatprep.subr.mxu0 0.0
  %207 = vmatpush2.msra.mxu0 0.0
  %208 = vmatprep.subr.mxu0 0.0
  %209 = vmatpush2.msra.mxu0 0.0
  %210 = vmatprep.mubr.f32.mxu0 0.0
  %211 = vmatmul.mubr.f32.gmra.mxu0 %v136
  %v212 = vpop.f32.mrf.mxu0
  %v213 = vadd.f32 0.0, %v212
  %v214 = vpop.f32.mrf.mxu0
  %v215 = vadd.f32 0.0, %v214
  %216 = vmatprep.mubr.f32.mxu0 0.0
  %217 = vmatmul.mubr.f32.gmra.mxu0 %v138
  %v218 = vpop.f32.mrf.mxu0
  %v219 = vadd.f32 0.0, %v218
  %v220 = vpop.f32.mrf.mxu0
  %v221 = vadd.f32 0.0, %v220
  %222 = vdwg.mxu0
  %v223 = vadd.f32 %v123, %v213
  %v224 = vadd.f32 %v124, %v215
  %v225 = vadd.f32 %v125, %v219
  %v226 = vadd.f32 %v126, %v221
  %227 = vst [vmem:[%s4] sm:$0xff] %v223
  %228 = vst [vmem:[%s4 + $0x8] sm:$0xff] %v224
  %229 = vst [vmem:[%s4 + $0x10] sm:$0xf] %v225
  %230 = vst [vmem:[%s4 + $0x18] sm:$0xf] %v226
  %s231 = scalar_lea.vmem %s0, 8
  %v232 = vld [vmem:[%s231] sm:$0xff]
  %v234 = vcombine.high %v232, %v232
  %v235 = vsel %vm41, %v232, 0
  %v237 = vsel %vm41, %v234, 0
  %239 = vmatprep.subr.mxu0 0.0
  %240 = vmatpush1.msra.mxu0 0.0
  %241 = vmatprep.subr.mxu0 0.0
  %242 = vmatpush1.msra.mxu0 0.0
  %243 = vmatprep.subr.mxu0 0.0
  %244 = vmatpush1.msra.mxu0 0.0
  %245 = vmatprep.subr.mxu0 0.0
  %246 = vmatpush1.msra.mxu0 0.0
  %247 = vmatprep.subr.mxu0 0.0
  %248 = vmatpush1.msra.mxu0 0.0
  %249 = vmatprep.subr.mxu0 0.0
  %250 = vmatpush1.msra.mxu0 0.0
  %251 = vmatprep.subr.mxu0 0.0
  %252 = vmatpush1.msra.mxu0 0.0
  %253 = vmatprep.subr.mxu0 0.0
  %254 = vmatpush1.msra.mxu0 0.0
  %255 = vmatprep.subr.mxu0 0.0
  %256 = vmatpush1.msra.mxu0 0.0
  %257 = vmatprep.subr.mxu0 0.0
  %258 = vmatpush1.msra.mxu0 0.0
  %259 = vmatprep.subr.mxu0 0.0
  %260 = vmatpush1.msra.mxu0 0.0
  %261 = vmatprep.subr.mxu0 0.0
  %262 = vmatpush1.msra.mxu0 0.0
  %263 = vmatprep.subr.mxu0 0.0
  %264 = vmatpush1.msra.mxu0 0.0
  %265 = vmatprep.subr.mxu0 0.0
  %266 = vmatpush1.msra.mxu0 0.0
  %267 = vmatprep.subr.mxu0 0.0
  %268 = vmatpush1.msra.mxu0 0.0
  %269 = vmatprep.subr.mxu0 %v237
  %270 = vmatpush1.msra.mxu0 %v235
  %271 = vmatprep.subr.mxu0 0.0
  %272 = vmatpush2.msra.mxu0 0.0
  %273 = vmatprep.subr.mxu0 0.0
  %274 = vmatpush2.msra.mxu0 0.0
  %275 = vmatprep.subr.mxu0 0.0
  %276 = vmatpush2.msra.mxu0 0.0
  %277 = vmatprep.subr.mxu0 0.0
  %278 = vmatpush2.msra.mxu0 0.0
  %279 = vmatprep.subr.mxu0 0.0
  %280 = vmatpush2.msra.mxu0 0.0
  %281 = vmatprep.subr.mxu0 0.0
  %282 = vmatpush2.msra.mxu0 0.0
  %283 = vmatprep.subr.mxu0 0.0
  %284 = vmatpush2.msra.mxu0 0.0
  %285 = vmatprep.subr.mxu0 0.0
  %286 = vmatpush2.msra.mxu0 0.0
  %287 = vmatprep.subr.mxu0 0.0
  %288 = vmatpush2.msra.mxu0 0.0
  %289 = vmatprep.subr.mxu0 0.0
  %290 = vmatpush2.msra.mxu0 0.0
  %291 = vmatprep.subr.mxu0 0.0
  %292 = vmatpush2.msra.mxu0 0.0
  %293 = vmatprep.subr.mxu0 0.0
  %294 = vmatpush2.msra.mxu0 0.0
  %295 = vmatprep.subr.mxu0 0.0
  %296 = vmatpush2.msra.mxu0 0.0
  %297 = vmatprep.subr.mxu0 0.0
  %298 = vmatpush2.msra.mxu0 0.0
  %299 = vmatprep.subr.mxu0 0.0
  %300 = vmatpush2.msra.mxu0 0.0
  %301 = vmatprep.subr.mxu0 0.0
  %302 = vmatpush2.msra.mxu0 0.0
  %303 = vmatprep.mubr.f32.mxu0 0.0
  %304 = vmatmul.mubr.f32.gmra.mxu0 %v36
  %v305 = vpop.f32.mrf.mxu0
  %v306 = vadd.f32 0.0, %v305
  %v307 = vpop.f32.mrf.mxu0
  %v308 = vadd.f32 0.0, %v307
  %309 = vmatprep.mubr.f32.mxu0 0.0
  %310 = vmatmul.mubr.f32.gmra.mxu0 %v39
  %v311 = vpop.f32.mrf.mxu0
  %v312 = vadd.f32 0.0, %v311
  %v313 = vpop.f32.mrf.mxu0
  %v314 = vadd.f32 0.0, %v313
  %315 = vdwg.mxu0
  %v316 = vadd.f32 %v24, %v306
  %v317 = vadd.f32 %v24, %v308
  %v318 = vadd.f32 %v29, %v312
  %v319 = vadd.f32 %v29, %v314
  %s320 = scalar_lea.vmem %s1, 32
  %v321 = vld [vmem:[%s320] sm:$0xff]
  %v322 = vld [vmem:[%s320 + $0x8] sm:$0xff]
  %v323 = vld [vmem:[%s320 + $0x10] sm:$0xf]
  %v324 = vld [vmem:[%s320 + $0x18] sm:$0xf]
  %v326 = vsel %vm41, %v323, 0
  %v329 = vsel %vm41, %v324, 0
  %331 = vmatprep.subr.mxu0 0.0
  %332 = vmatpush1.msra.mxu0 0.0
  %333 = vmatprep.subr.mxu0 0.0
  %334 = vmatpush1.msra.mxu0 0.0
  %335 = vmatprep.subr.mxu0 0.0
  %336 = vmatpush1.msra.mxu0 0.0
  %337 = vmatprep.subr.mxu0 0.0
  %338 = vmatpush1.msra.mxu0 0.0
  %339 = vmatprep.subr.mxu0 0.0
  %340 = vmatpush1.msra.mxu0 0.0
  %341 = vmatprep.subr.mxu0 0.0
  %342 = vmatpush1.msra.mxu0 0.0
  %343 = vmatprep.subr.mxu0 0.0
  %344 = vmatpush1.msra.mxu0 0.0
  %345 = vmatprep.subr.mxu0 0.0
  %346 = vmatpush1.msra.mxu0 0.0
  %347 = vmatprep.subr.mxu0 0.0
  %348 = vmatpush1.msra.mxu0 0.0
  %349 = vmatprep.subr.mxu0 0.0
  %350 = vmatpush1.msra.mxu0 0.0
  %351 = vmatprep.subr.mxu0 0.0
  %352 = vmatpush1.msra.mxu0 0.0
  %353 = vmatprep.subr.mxu0 0.0
  %354 = vmatpush1.msra.mxu0 0.0
  %355 = vmatprep.subr.mxu0 0.0
  %356 = vmatpush1.msra.mxu0 0.0
  %357 = vmatprep.subr.mxu0 0.0
  %358 = vmatpush1.msra.mxu0 0.0
  %359 = vmatprep.subr.mxu0 %v329
  %360 = vmatpush1.msra.mxu0 %v326
  %361 = vmatprep.subr.mxu0 %v322
  %362 = vmatpush1.msra.mxu0 %v321
  %363 = vmatprep.subr.mxu0 0.0
  %364 = vmatpush2.msra.mxu0 0.0
  %365 = vmatprep.subr.mxu0 0.0
  %366 = vmatpush2.msra.mxu0 0.0
  %367 = vmatprep.subr.mxu0 0.0
  %368 = vmatpush2.msra.mxu0 0.0
  %369 = vmatprep.subr.mxu0 0.0
  %370 = vmatpush2.msra.mxu0 0.0
  %371 = vmatprep.subr.mxu0 0.0
  %372 = vmatpush2.msra.mxu0 0.0
  %373 = vmatprep.subr.mxu0 0.0
  %374 = vmatpush2.msra.mxu0 0.0
  %375 = vmatprep.subr.mxu0 0.0
  %376 = vmatpush2.msra.mxu0 0.0
  %377 = vmatprep.subr.mxu0 0.0
  %378 = vmatpush2.msra.mxu0 0.0
  %379 = vmatprep.subr.mxu0 0.0
  %380 = vmatpush2.msra.mxu0 0.0
  %381 = vmatprep.subr.mxu0 0.0
  %382 = vmatpush2.msra.mxu0 0.0
  %383 = vmatprep.subr.mxu0 0.0
  %384 = vmatpush2.msra.mxu0 0.0
  %385 = vmatprep.subr.mxu0 0.0
  %386 = vmatpush2.msra.mxu0 0.0
  %387 = vmatprep.subr.mxu0 0.0
  %388 = vmatpush2.msra.mxu0 0.0
  %389 = vmatprep.subr.mxu0 0.0
  %390 = vmatpush2.msra.mxu0 0.0
  %391 = vmatprep.subr.mxu0 0.0
  %392 = vmatpush2.msra.mxu0 0.0
  %393 = vmatprep.subr.mxu0 0.0
  %394 = vmatpush2.msra.mxu0 0.0
  %395 = vmatprep.mubr.f32.mxu0 0.0
  %396 = vmatmul.mubr.f32.gmra.mxu0 %v136
  %v397 = vpop.f32.mrf.mxu0
  %v398 = vadd.f32 0.0, %v397
  %v399 = vpop.f32.mrf.mxu0
  %v400 = vadd.f32 0.0, %v399
  %401 = vmatprep.mubr.f32.mxu0 0.0
  %402 = vmatmul.mubr.f32.gmra.mxu0 %v138
  %v403 = vpop.f32.mrf.mxu0
  %v404 = vadd.f32 0.0, %v403
  %v405 = vpop.f32.mrf.mxu0
  %v406 = vadd.f32 0.0, %v405
  %407 = vdwg.mxu0
  %v408 = vadd.f32 %v316, %v398
  %v409 = vadd.f32 %v317, %v400
  %v410 = vadd.f32 %v318, %v404
  %v411 = vadd.f32 %v319, %v406
  %s412 = scalar_lea.vmem %s4, 32
  %413 = vst [vmem:[%s412] sm:$0xff] %v408
  %414 = vst [vmem:[%s412 + $0x8] sm:$0xff] %v409
  %415 = vst [vmem:[%s412 + $0x10] sm:$0xf] %v410
  %416 = vst [vmem:[%s412 + $0x18] sm:$0xf] %v411
  // Predicated region
  $region18: #{tpu_custom_call.1} parent=0 // pred_check
    _
  $region19: #{tpu_custom_call.1} parent=0 // pred_check_branch
    %418 = sbr.rel (0) target = $region21
  $region20: #{tpu_custom_call.1} parent=0 // pred_region
    _
  $region21: #{tpu_custom_call.1} parent=0 // pred_fallthru
    _
  // Predicated region
  $region22: #{tpu_custom_call.1} parent=0 // pred_check
    _
  $region23: #{tpu_custom_call.1} parent=0 // pred_check_branch
    %420 = sbr.rel (0) target = $region25
  $region24: #{tpu_custom_call.1} parent=0 // pred_region
    _
  $region25: #{tpu_custom_call.1} parent=0 // pred_fallthru
    _

</llo_original>
